<compile_context>
chip_gen: v5e
topology: v5e:2x2
jax: 0.10.0
libtpu: 0.0.40
codegen_flags: <defaults>
</compile_context>

<pallas_src>
import functools

import jax
import jax.numpy as jnp
from jax.experimental import pallas as pl
from jax.experimental.pallas import tpu as pltpu


def _round_up(x: int, m: int) -> int:
    return ((x + m - 1) // m) * m


def _pick_tiles(batch: int, in_size: int, out_size: int, dtype) -> tuple[int, int, int]:
    """Lane-dense, MXU-friendly tiles; prefer divisors of the true shape so the
    hot path never has to zero-pad the activation per call."""
    itemsize = jnp.dtype(dtype).itemsize
    sub = max(8, 32 // itemsize)            # sublane packing: 8 f32, 16 bf16, 32 int8/fp8

    # --- M tile: prefer a divisor of batch (no per-call activation row pad) ---
    tm = None
    for cand in (512, 256, 128):
        if batch % cand == 0:
            tm = cand
            break
    if tm is None:
        tm = _round_up(batch, sub) if batch <= 512 else 256   # rare: pad rows

    # --- K tile: large (amortizes ~0.35us/step overhead), prefer divisor of in_size ---
    if in_size < 128:
        tk = in_size                         # single full-K block, no pad needed
    else:
        tk = None
        for cand in (2048, 1024, 512, 256, 128):
            if in_size % cand == 0:
                tk = cand
                break
        if tk is None:
            tk = _round_up(in_size, 128) if in_size <= 2048 else 512  # pad K

    # --- N tile: lane-dense (multiple of 128), as wide as the layer allows ---
    tn = None
    for cand in (512, 256, 128):
        if out_size % cand == 0:
            tn = cand
            break
    if tn is None:
        tn = _round_up(out_size, 128) if out_size <= 512 else 256     # pad N

    # v7x megacore: if the M axis collapses to one block, keep >= 2 N blocks so
    # both TensorCores get work (each still lane-dense at >= 128).
    if batch <= tm and out_size <= tn and tn > 128 and out_size % (tn // 2) == 0:
        tn //= 2

    return tm, tk, tn


def mlp_kernel(x_ref, wt_ref, b_ref, o_ref, acc_ref, *, precision=None):
    """One (i, j, k) grid step of y = tanh(x @ Wt + b)."""
    k = pl.program_id(2)

    @pl.when(k == 0)
    def _():
        acc_ref[...] = jnp.zeros_like(acc_ref)

    # MXU matmul; default precision = single-pass bf16 MXU path, f32 accumulation.
    acc_ref[...] += jnp.dot(
        x_ref[...],
        wt_ref[...],
        preferred_element_type=jnp.float32,
        precision=precision,
    )

    # Epilogue only on the final K step: bias add + tanh + cast (all in f32 so it
    # is safe on v5e's no-bf16 VPU/EUP path as well).
    @pl.when(k == pl.num_programs(2) - 1)
    def _():
        y = acc_ref[...] + b_ref[...].astype(jnp.float32)   # (1, tn) broadcasts over rows
        o_ref[...] = jnp.tanh(y).astype(o_ref.dtype)


def prepare_mlp_params(weight, bias, tk: int, tn: int, param_dtype=None):
    """One-time parameter prep (do at init, NOT per forward call).

    weight: (out, in) PyTorch convention -> stored transposed & zero-padded as
            (In_pad, Out_pad) so the kernel computes x @ Wt directly.
    bias:   (out,) -> (1, Out_pad).
    param_dtype: optionally cast weights (e.g. jnp.bfloat16 to halve the HBM
            weight stream on v6e/v7x; fp8 is also possible on v7x).
    """
    out_size, in_size = weight.shape
    if param_dtype is not None:
        weight = weight.astype(param_dtype)
    kp = _round_up(in_size, tk)
    np_ = _round_up(out_size, tn)
    wt = jnp.zeros((kp, np_), weight.dtype).at[:in_size, :out_size].set(weight.T)
    b2 = jnp.zeros((1, np_), bias.dtype).at[0, :out_size].set(bias)
    return wt, b2


@functools.partial(jax.jit, static_argnames=("out_size", "tm", "tk", "tn", "precision"))
def mlp_layer_forward(x, wt, b2, *, out_size: int, tm: int, tk: int, tn: int,
                      precision=None):
    """x: (B, In); wt: (In_pad, Out_pad) pre-transposed; b2: (1, Out_pad)."""
    batch, in_size = x.shape
    kp, np_ = wt.shape

    # Zero-pad the activation only if the chosen tiles demand it (tile picking
    # prefers divisors of the real shape, so this branch is usually dead).
    bp = _round_up(batch, tm)
    if (bp, kp) != (batch, in_size):
        xp = jnp.zeros((bp, kp), x.dtype).at[:batch, :in_size].set(x)
    else:
        xp = x

    grid = (bp // tm, np_ // tn, kp // tk)

    x_elt = jnp.dtype(x.dtype).itemsize
    w_elt = jnp.dtype(wt.dtype).itemsize
    o_elt = x_elt  # output dtype = x.dtype

    # VMEM budget from the actual tiles (double-buffered) + f32 accumulator,
    # with 2x headroom; clamp to 56 MiB so it is per-TC safe on v7x (64 MiB)
    # while leaving plenty of room on v5e/v6e (128 MiB).
    vmem_needed = (
        2 * tm * tk * x_elt        # x tiles
        + 2 * tk * tn * w_elt      # weight tiles
        + 2 * 1 * tn * w_elt       # bias tiles
        + 2 * tm * tn * o_elt      # output tiles
        + tm * tn * 4              # f32 accumulator scratch
    )
    vmem_limit = int(min(max(2 * vmem_needed, 32 << 20), 56 << 20))

    # Accurate re-streaming byte counts (scheduler hint only).
    n_i, n_j = bp // tm, np_ // tn
    cost = pl.CostEstimate(
        flops=2 * bp * np_ * kp,
        transcendentals=bp * np_,                       # tanh
        bytes_accessed=(xp.size * x_elt) * n_j          # x re-read per N block
        + (wt.size * w_elt) * n_i                       # Wt re-read per M block
        + (b2.size * w_elt) * n_i
        + bp * np_ * o_elt,                             # output write
    )

    out_padded = pl.pallas_call(
        functools.partial(mlp_kernel, precision=precision),
        out_shape=jax.ShapeDtypeStruct((bp, np_), x.dtype),
        grid_spec=pltpu.PrefetchScalarGridSpec(
            num_scalar_prefetch=0,
            grid=grid,
            in_specs=[
                pl.BlockSpec((tm, tk), lambda i, j, k: (i, k)),   # x
                pl.BlockSpec((tk, tn), lambda i, j, k: (k, j)),   # Wt
                pl.BlockSpec((1, tn), lambda i, j, k: (0, j)),    # bias (epilogue only)
            ],
            out_specs=pl.BlockSpec((tm, tn), lambda i, j, k: (i, j)),
            scratch_shapes=[pltpu.VMEM((tm, tn), jnp.float32)],
        ),
        compiler_params=pltpu.CompilerParams(
            dimension_semantics=("parallel", "parallel", "arbitrary"),
            vmem_limit_bytes=vmem_limit,
        ),
        cost_estimate=cost,
    )(xp, wt, b2)

    if (bp, np_) != (batch, out_size):
        return out_padded[:batch, :out_size]
    return out_padded


if __name__ == "__main__":
    key = jax.random.PRNGKey(0)
    k_x, k_w, k_b = jax.random.split(key, 3)

    batch = 8
    input_size = 32
    output_size = 32

    # weight_init: weights ~ N(0, 0.001), bias ~ N(0, 0.0001)  (PyTorch (out, in) layout)
    weight = 0.001 * jax.random.normal(k_w, (output_size, input_size), dtype=jnp.float32)
    bias = 0.0001 * jax.random.normal(k_b, (output_size,), dtype=jnp.float32)
    x = jax.random.normal(k_x, (batch, input_size), dtype=jnp.float32)

    # One-time parameter prep (transpose + pad), then the hot forward path.
    tm, tk, tn = _pick_tiles(batch, input_size, output_size, x.dtype)
    wt, b2 = prepare_mlp_params(weight, bias, tk, tn)

    out = mlp_layer_forward(x, wt, b2, out_size=output_size, tm=tm, tk=tk, tn=tn)
    out = jax.block_until_ready(out)

    # Reference check (plain JAX, high precision).  The kernel intentionally uses
    # the default (bf16-MXU) matmul precision, so tolerance is relaxed accordingly.
    ref = jnp.tanh(
        jnp.dot(x, weight.T, precision=jax.lax.Precision.HIGHEST) + bias
    )
    assert out.shape == (batch, output_size)
    assert jnp.allclose(out, ref, atol=2e-3, rtol=2e-2), "mismatch vs reference"

    print("KERNEL_OK")
</pallas_src>

<mosaic_0001>
module attributes {stable_mosaic.version = 11 : i64} {
  func.func @mlp_kernel(%arg0: i32, %arg1: i32, %arg2: i32, %arg3: memref<8x32xf32, #tpu.memory_space<vmem>>, %arg4: memref<32x128xf32, #tpu.memory_space<vmem>>, %arg5: memref<1x128xf32, #tpu.memory_space<vmem>>, %arg6: memref<8x128xf32, #tpu.memory_space<vmem>>, %arg7: memref<8x128xf32, #tpu.memory_space<vmem>>) attributes {dimension_semantics = [#tpu.dimension_semantics<parallel>, #tpu.dimension_semantics<parallel>, #tpu.dimension_semantics<arbitrary>], iteration_bounds = array<i64: 1, 1, 1>, scalar_prefetch = 0 : i64, scratch_operands = 1 : i64, tpu.core_type = #tpu.core_type<tc>, window_params = [{transform_indices = @transform_0, window_bounds = array<i64: 8, 32>}, {transform_indices = @transform_1, window_bounds = array<i64: 32, 128>}, {transform_indices = @transform_2, window_bounds = array<i64: 1, 128>}, {transform_indices = @transform_3, window_bounds = array<i64: 8, 128>}]} {
    %c0_i32 = arith.constant 0 : i32
    %0 = arith.cmpi eq, %arg2, %c0_i32 : i32
    %1 = arith.extui %0 : i1 to i32
    %c0_i32_0 = arith.constant 0 : i32
    %2 = arith.cmpi ne, %1, %c0_i32_0 : i32
    scf.if %2 {
      %cst_10 = arith.constant 0.000000e+00 : f32
      %12 = vector.broadcast %cst_10 : f32 to vector<8x128xf32>
      %c0_11 = arith.constant 0 : index
      %c0_12 = arith.constant 0 : index
      %13 = vector.load %arg7[%c0_11, %c0_12] : memref<8x128xf32, #tpu.memory_space<vmem>>, vector<8x128xf32>
      tpu.vector_store %arg7[%c0_11, %c0_12], %12 {strides = array<i32>} : memref<8x128xf32, #tpu.memory_space<vmem>>, vector<8x128xf32>,
    } else {
    }
    %c0 = arith.constant 0 : index
    %c0_1 = arith.constant 0 : index
    %3 = vector.load %arg7[%c0, %c0_1] : memref<8x128xf32, #tpu.memory_space<vmem>>, vector<8x128xf32>
    %c0_2 = arith.constant 0 : index
    %c0_3 = arith.constant 0 : index
    %4 = vector.load %arg3[%c0_2, %c0_3] : memref<8x32xf32, #tpu.memory_space<vmem>>, vector<8x32xf32>
    %c0_4 = arith.constant 0 : index
    %c0_5 = arith.constant 0 : index
    %5 = vector.load %arg4[%c0_4, %c0_5] : memref<32x128xf32, #tpu.memory_space<vmem>>, vector<32x128xf32>
    %cst = arith.constant dense<0.000000e+00> : vector<8x128xf32>
    %6 = tpu.matmul %4, %5, %cst {dimension_numbers = #tpu.dot_dimension_numbers<[1], [0], [0], [1], [0, 0, 1, 1], [], []>} : vector<8x32xf32>, vector<32x128xf32>, vector<8x128xf32> -> vector<8x128xf32>
    %7 = arith.addf %3, %6 : vector<8x128xf32>
    %c0_6 = arith.constant 0 : index
    %c0_7 = arith.constant 0 : index
    %8 = vector.load %arg7[%c0_6, %c0_7] : memref<8x128xf32, #tpu.memory_space<vmem>>, vector<8x128xf32>
    tpu.vector_store %arg7[%c0_6, %c0_7], %7 {strides = array<i32>} : memref<8x128xf32, #tpu.memory_space<vmem>>, vector<8x128xf32>,
    %c0_i32_8 = arith.constant 0 : i32
    %9 = arith.cmpi eq, %arg2, %c0_i32_8 : i32
    %10 = arith.extui %9 : i1 to i32
    %c0_i32_9 = arith.constant 0 : i32
    %11 = arith.cmpi ne, %10, %c0_i32_9 : i32
    scf.if %11 {
      %c0_10 = arith.constant 0 : index
      %c0_11 = arith.constant 0 : index
      %12 = vector.load %arg7[%c0_10, %c0_11] : memref<8x128xf32, #tpu.memory_space<vmem>>, vector<8x128xf32>
      %c0_12 = arith.constant 0 : index
      %c0_13 = arith.constant 0 : index
      %13 = vector.load %arg5[%c0_12, %c0_13] : memref<1x128xf32, #tpu.memory_space<vmem>>, vector<1x128xf32>
      %14 = vector.broadcast %13 : vector<1x128xf32> to vector<8x128xf32>
      %15 = arith.addf %12, %14 : vector<8x128xf32>
      %16 = math.tanh %15 : vector<8x128xf32>
      %c0_14 = arith.constant 0 : index
      %c0_15 = arith.constant 0 : index
      %17 = vector.load %arg6[%c0_14, %c0_15] : memref<8x128xf32, #tpu.memory_space<vmem>>, vector<8x128xf32>
      tpu.vector_store %arg6[%c0_14, %c0_15], %16 {strides = array<i32>} : memref<8x128xf32, #tpu.memory_space<vmem>>, vector<8x128xf32>,
    } else {
    }
    return
  }
  func.func @transform_0(%arg0: i32, %arg1: i32, %arg2: i32) -> (i32, i32) {
    %c0_i32 = arith.constant 0 : i32
    return %arg0, %arg2 : i32, i32
  }
  func.func @transform_1(%arg0: i32, %arg1: i32, %arg2: i32) -> (i32, i32) {
    %c0_i32 = arith.constant 0 : i32
    return %arg2, %arg1 : i32, i32
  }
  func.func @transform_2(%arg0: i32, %arg1: i32, %arg2: i32) -> (i32, i32) {
    %c0_i32 = arith.constant 0 : i32
    %c0_i32_0 = arith.constant 0 : i32
    return %c0_i32, %arg1 : i32, i32
  }
  func.func @transform_3(%arg0: i32, %arg1: i32, %arg2: i32) -> (i32, i32) {
    %c0_i32 = arith.constant 0 : i32
    return %arg0, %arg1 : i32, i32
  }
}

</mosaic_0001>

<llo_original>
// kernel: mlp_layer_forward.1
$region0: #{mlp_layer_forward.1}
  #allocation0 [shape = 'u32[]', space=smem, size = 0x4, offset = 0x4, fixed_abs, tag = 'smem constant byte address 0x4 - core index']
  #allocation1 [shape = 'u32[72,128]{1,0:T(1,128)}', space=vmem, size = 0x9000, scoped, tag = 'internal scratch']
  #allocation2 [shape = 'f32[8,128]{1,0:T(8,128)}', space=vmem, size = 0x1000, scoped, tag = 'scratch operand']
  %s0 = inlined_call_operand.hbm [shape: f32[8,32], index: 0, kind: input, shape index: {}]
  %s1 = inlined_call_operand.hbm [shape: f32[32,128], index: 1, kind: input, shape index: {}]
  %s2 = inlined_call_operand.vmem [shape: f32[1,128], index: 2, kind: input, shape index: {}]
  %s3 = inlined_call_operand.hbm [shape: f32[8,128], index: 3, kind: output, shape index: {}]
  %s4 = sld [smem:[#allocation0]]
  $region38: #{mlp_layer_forward.1} parent=0
    _
  %s6 = ssub.s32 1, %s4
  %s7 = scalar_select 0, %s6, %s4
  $region1: #{mlp_layer_forward.1} parent=0
    #allocation3 [shape = 'u8[4096]{0}', space=vmem, size = 0x1000, scoped, tag = 'input window, operand 0, single buffered']
    #allocation4 [shape = 's32[1]{0}', space=sflag, size = 0x4, scoped, tag = 'scoped memory for mlp_layer_forward.1']
    #allocation5 [shape = 's32[1]{0}', space=sflag, size = 0x4, scoped, tag = 'scoped memory for mlp_layer_forward.1']
    #allocation6 [shape = 'u8[16384]{0}', space=vmem, size = 0x4000, scoped, tag = 'input window, operand 1, single buffered']
    #allocation7 [shape = 's32[1]{0}', space=sflag, size = 0x4, scoped, tag = 'scoped memory for mlp_layer_forward.1']
    #allocation8 [shape = 'u8[4096]{0}', space=vmem, size = 0x1000, scoped, tag = 'output window, operand 0, single buffered']
    %8 = vsyncpa [#allocation4], 0
    %9 = vsyncpa [#allocation7], 0
    %10 = vsyncpa [#allocation5], 0
    // Predicated region
    $region2: #{mlp_layer_forward.1} parent=1 // pred_check
      _
    $region3: #{mlp_layer_forward.1} parent=1 // pred_check_branch
      %12 = sbr.rel (0) target = $region5
    $region4: #{mlp_layer_forward.1} parent=1 // pred_region
      %14 = vsyncadd [#allocation4], 0
      %s16 = sshll.u32 %s0, 4
      %s17 = int_to_ptr.hbm [resolvable:$true] %s16
      %s18 = sshll.u32 [#allocation3], 4
      %s19 = int_to_ptr.vmem [resolvable:$true] %s18
      %21 = dma.hbm_to_vmem [thread:$0]  %s17, 128, %s19, [#allocation4]
    $region5: #{mlp_layer_forward.1} parent=1 // pred_fallthru
      _
    // Predicated region
    $region6: #{mlp_layer_forward.1} parent=1 // pred_check
      _
    $region7: #{mlp_layer_forward.1} parent=1 // pred_check_branch
      %23 = sbr.rel (0) target = $region9
    $region8: #{mlp_layer_forward.1} parent=1 // pred_region
      %25 = vsyncadd [#allocation7], 0
      %s26 = sshll.u32 %s1, 4
      %s27 = int_to_ptr.hbm [resolvable:$true] %s26
      %s28 = sshll.u32 [#allocation6], 4
      %s29 = int_to_ptr.vmem [resolvable:$true] %s28
      %34 = dma.hbm_to_vmem [thread:$0]  %s27, 512, %s29, [#allocation7], 128, 128, 8
    $region9: #{mlp_layer_forward.1} parent=1 // pred_fallthru
      _
    // Predicated region
    $region10: #{mlp_layer_forward.1} parent=1 // pred_check
      _
    $region11: #{mlp_layer_forward.1} parent=1 // pred_check_branch
      %36 = sbr.rel (0) target = $region13
    $region12: #{mlp_layer_forward.1} parent=1 // pred_region
      _
    $region13: #{mlp_layer_forward.1} parent=1 // pred_fallthru
      _
    // Predicated region
    $region14: #{mlp_layer_forward.1} parent=1 // pred_check
      _
    $region15: #{mlp_layer_forward.1} parent=1 // pred_check_branch
      %38 = sbr.rel (0) target = $region17
    $region16: #{mlp_layer_forward.1} parent=1 // pred_region
      %40 = dma.done [#allocation4], 128
    $region17: #{mlp_layer_forward.1} parent=1 // pred_fallthru
      _
    // Predicated region
    $region18: #{mlp_layer_forward.1} parent=1 // pred_check
      _
    $region19: #{mlp_layer_forward.1} parent=1 // pred_check_branch
      %42 = sbr.rel (0) target = $region21
    $region20: #{mlp_layer_forward.1} parent=1 // pred_region
      %44 = dma.done [#allocation7], 512
    $region21: #{mlp_layer_forward.1} parent=1 // pred_fallthru
      _
    %p45 = scmp.eq.s32.totalorder 0, 0
    // Predicated region
    $region22: #{mlp_layer_forward.1} parent=1 // pred_check
      %p46 = pneg %p45
    $region23: #{mlp_layer_forward.1} parent=1 // pred_check_branch
      %48 = sbr.rel (%p46) target = $region25
    $region24: #{mlp_layer_forward.1} parent=1 // pred_region
      %49 = vst [vmem:[#allocation2] sm:$0xff] 0.0
    $region25: #{mlp_layer_forward.1} parent=1 // pred_fallthru
      _
    %v50 = vld [vmem:[#allocation2] sm:$0xff]
    %v51 = vld [vmem:[#allocation3] sm:$0xff]
    %v52 = vld [vmem:[#allocation6] sm:$0xff]
    %v53 = vld [vmem:[#allocation6 + $0x8] sm:$0xff]
    %v54 = vld [vmem:[#allocation6 + $0x10] sm:$0xff]
    %v55 = vld [vmem:[#allocation6 + $0x18] sm:$0xff]
    %vm56 = vcmask 261120
    %v58 = vsel %vm56, %v51, 0
    %60 = vmatpush.msra.mxu0 0.0
    %61 = vmatpush.msra.mxu0 0.0
    %62 = vmatpush.msra.mxu0 0.0
    %63 = vmatpush.msra.mxu0 0.0
    %64 = vmatpush.msra.mxu0 0.0
    %65 = vmatpush.msra.mxu0 0.0
    %66 = vmatpush.msra.mxu0 0.0
    %67 = vmatpush.msra.mxu0 0.0
    %68 = vmatpush.msra.mxu0 0.0
    %69 = vmatpush.msra.mxu0 0.0
    %70 = vmatpush.msra.mxu0 0.0
    %71 = vmatpush.msra.mxu0 0.0
    %72 = vmatpush.msra.mxu0 %v55
    %73 = vmatpush.msra.mxu0 %v54
    %74 = vmatpush.msra.mxu0 %v53
    %75 = vmatpush.msra.mxu0 %v52
    %76 = vmatmul.f32.gmra.mxu0 %v58
    %v77 = vpop.f32.mrf.mxu0
    %v78 = vadd.f32 0.0, %v77
    %79 = vdwg.mxu0
    %v80 = vadd.f32 %v50, %v78
    %81 = vst [vmem:[#allocation2] sm:$0xff] %v80
    // Predicated region
    $region26: #{mlp_layer_forward.1} parent=1 // pred_check
      %p82 = pneg %p45
    $region27: #{mlp_layer_forward.1} parent=1 // pred_check_branch
      %84 = sbr.rel (%p82) target = $region29
    $region28: #{mlp_layer_forward.1} parent=1 // pred_region
      %v85 = vld [vmem:[#allocation2] sm:$0xff]
      %v86 = vld [vmem:[%s2] sm:$0x1]
      %v88 = vperm.slane %v86, 0
      %v90 = vadd.f32 %v85, %v88
      %v91 = vtanh.pop %v90
      %92 = vst [vmem:[#allocation8] sm:$0xff] %v91
    $region29: #{mlp_layer_forward.1} parent=1 // pred_fallthru
      _
    // Predicated region
    $region30: #{mlp_layer_forward.1} parent=1 // pred_check
      _
    $region31: #{mlp_layer_forward.1} parent=1 // pred_check_branch
      %94 = sbr.rel (0) target = $region33
    $region32: #{mlp_layer_forward.1} parent=1 // pred_region
      %96 = vsyncadd [#allocation5], 0
      %s98 = sshll.u32 [#allocation8], 4
      %s99 = int_to_ptr.vmem [resolvable:$true] %s98
      %s100 = sshll.u32 %s3, 4
      %s101 = int_to_ptr.hbm [resolvable:$true] %s100
      %103 = dma.vmem_to_hbm [thread:$0]  %s99, 128, %s101, [#allocation5]
    $region33: #{mlp_layer_forward.1} parent=1 // pred_fallthru
      _
    // Predicated region
    $region34: #{mlp_layer_forward.1} parent=1 // pred_check
      _
    $region35: #{mlp_layer_forward.1} parent=1 // pred_check_branch
      %105 = sbr.rel (0) target = $region37
    $region36: #{mlp_layer_forward.1} parent=1 // pred_region
      %107 = dma.done [#allocation5], 128
    $region37: #{mlp_layer_forward.1} parent=1 // pred_fallthru
      _
    %108 = vsyncpa [#allocation4], 1
    %109 = vsyncpa [#allocation7], 1
    %110 = vsyncpa [#allocation5], 1

</llo_original>
